<compile_context>
chip_gen: v7x
topology: tpu7x:2x2x1
jax: 0.10.0
libtpu: 0.0.40
codegen_flags: <defaults>
</compile_context>

<pallas_src>
from functools import partial

import jax
import jax.numpy as jnp
from jax.experimental import pallas as pl
from jax.experimental.pallas import tpu as pltpu


def ctma2_kernel(x_ref, e_ref, wx_ref, we_ref, o_ref, *, scale):
    # x_ref: (Bt, N, Dx)   e_ref: (Bt, N, De)
    # wx_ref: (Dx, 2D) = [Wq^T[:Dx] | Wk^T[:Dx]]   we_ref: (De, 2D) = [Wq^T[Dx:] | Wk^T[Dx:]]
    # o_ref: (Bt, N, Dx)
    Bt, N, Dx = x_ref.shape
    De = e_ref.shape[-1]
    two_d = wx_ref.shape[-1]
    D = two_d // 2

    x = x_ref[...]
    e = e_ref[...]

    # Fused Q/K projection over flattened rows (cat(x,e) @ W^T == x @ Wx + e @ We).
    # The reshape is a free view when N is a multiple of the sublane tile (8 for f32).
    xf = x.reshape(Bt * N, Dx)
    ef = e.reshape(Bt * N, De)
    qk = (jnp.dot(xf, wx_ref[...], preferred_element_type=jnp.float32)
          + jnp.dot(ef, we_ref[...], preferred_element_type=jnp.float32))   # (Bt*N, 2D) f32
    qk = qk.astype(x.dtype).reshape(Bt, N, two_d)

    # Reassociated attention (exact for activation='none', identity dropout, no mask):
    #   out = scale*(q k^T) v + x == q @ (scale * (k^T v)) + x,   v = x
    if D % 128 == 0:
        # Lane-tile-aligned split of qk -> free slices.
        q = qk[..., :D]
        k = qk[..., D:]
        kv = jnp.einsum('bnd,bnt->bdt', k, x,
                        preferred_element_type=jnp.float32) * scale          # (Bt, D, Dx)
        out = jnp.einsum('bnd,bdt->bnt', q, kv.astype(x.dtype),
                         preferred_element_type=jnp.float32)                 # (Bt, N, Dx)
    else:
        # Splitting qk at column D would cross a (8,128) lane tile.  Contract full qk
        # against v (MXU K-padding makes this the same cost), keep the k rows of the tiny
        # (2D, Dx) result (sublane-aligned slice), zero-pad the q rows, and reuse full qk.
        kv_full = jnp.einsum('bnc,bnt->bct', qk, x,
                             preferred_element_type=jnp.float32)             # (Bt, 2D, Dx)
        kv = (kv_full[:, D:, :] * scale).astype(x.dtype)                     # (Bt, D, Dx)
        kvs = jnp.concatenate([kv, jnp.zeros_like(kv)], axis=1)              # (Bt, 2D, Dx)
        out = jnp.einsum('bnc,bct->bnt', qk, kvs,
                         preferred_element_type=jnp.float32)                 # (Bt, N, Dx)

    o_ref[...] = (out + x.astype(jnp.float32)).astype(o_ref.dtype)


def _vmem_bytes_estimate(block_b, N, Dx, De, D, in_item, out_item):
    rows = block_b * N
    io = 2 * rows * (Dx + De) * in_item + 2 * rows * Dx * out_item   # double-buffered x/e/out
    w = 2 * (Dx + De) * 2 * D * in_item                               # double-buffered fused weights
    tmp = rows * 2 * D * (4 + in_item)                                # qk f32 accum + cast
    tmp += 2 * block_b * 2 * D * Dx * (4 + in_item)                   # kv_full / kvs
    tmp += rows * Dx * 4 + rows * (Dx + De) * 4                       # out f32, residual upcast slack
    return io + w + tmp


def _choose_block_b(B, N, Dx, De, D, in_item, out_item, vmem_budget, target_rows=256):
    divisors = [d for d in range(1, B + 1) if B % d == 0]
    fitting = [d for d in divisors
               if _vmem_bytes_estimate(d, N, Dx, De, D, in_item, out_item) <= vmem_budget]
    if not fitting:
        fitting = [1]
    # Prefer >= 2 grid steps so v7x's two TensorCores both get work.
    pref = [d for d in fitting if B // d >= 2] or fitting
    big = [d for d in pref if d * N >= target_rows]
    return min(big) if big else max(pref)


def ctma2_forward(x, e, wq, wk, *, dropout=0.0, activation='none', prediction_mode=False,
                  block_b=None, feed_dtype=jnp.bfloat16, out_dtype=None,
                  vmem_budget_bytes=40 << 20):
    """Forward of Causal_Temporal_Map_Attention_2 (default / inference path).

    x: (B, N, Dx), e: (B, N, De); wq, wk: torch nn.Linear weights (D, D), D = Dx + De
    (y = x_e @ W^T, bias=False).  feed_dtype controls the MXU feed dtype (default bf16,
    f32 accumulation; pass jnp.float32 or None for a full-precision value/residual path).
    """
    if activation != 'none' or prediction_mode or dropout != 0.0:
        raise NotImplementedError(
            "Only activation='none', dropout=0 (inference), prediction_mode=False "
            "is implemented in this Pallas kernel.")

    B, N, Dx = x.shape
    Be, Ne, De = e.shape
    assert (Be, Ne) == (B, N), "x and e must share batch/sequence dims"
    D = Dx + De
    assert wq.shape == (D, D) and wk.shape == (D, D), "weights must be (Dx+De, Dx+De)"

    scale = D ** (-0.5)
    out_dtype = x.dtype if out_dtype is None else jnp.dtype(out_dtype)
    feed_dtype = x.dtype if feed_dtype is None else jnp.dtype(feed_dtype)

    # Fuse Q/K weights wrapper-side: columns [q | k], rows split by x-features vs e-features
    # -> no in-kernel concat/slice of activations and a 2D-wide (lane-dense) projection output.
    wq_t, wk_t = wq.T, wk.T
    wx = jnp.concatenate([wq_t[:Dx], wk_t[:Dx]], axis=1).astype(feed_dtype)   # (Dx, 2D)
    we = jnp.concatenate([wq_t[Dx:], wk_t[Dx:]], axis=1).astype(feed_dtype)   # (De, 2D)
    x_f = x.astype(feed_dtype)
    e_f = e.astype(feed_dtype)

    in_item = jnp.dtype(feed_dtype).itemsize
    out_item = jnp.dtype(out_dtype).itemsize
    if block_b is None:
        block_b = _choose_block_b(B, N, Dx, De, D, in_item, out_item, vmem_budget_bytes)
    assert B % block_b == 0, "block_b must divide the batch size"

    est = _vmem_bytes_estimate(block_b, N, Dx, De, D, in_item, out_item)
    vmem_limit = int(min(max(2 * est, 32 << 20), 64 << 20))   # >=32 MiB (v5e), <=64 MiB (v7x)
    vmem_limit = max(vmem_limit, int(1.25 * est))

    second_c = D if D % 128 == 0 else 2 * D
    cost = pl.CostEstimate(
        flops=int(2 * B * N * (Dx + De) * 2 * D        # fused q/k projections
                  + 2 * 2 * B * N * second_c * Dx),    # k^T v and q @ (k^T v)
        transcendentals=0,
        bytes_accessed=int(in_item * (B * N * (Dx + De) + (Dx + De) * 2 * D)
                           + out_item * B * N * Dx),
    )

    kernel = partial(ctma2_kernel, scale=scale)
    grid = (B // block_b,)

    return pl.pallas_call(
        kernel,
        out_shape=jax.ShapeDtypeStruct((B, N, Dx), out_dtype),
        grid_spec=pltpu.PrefetchScalarGridSpec(
            num_scalar_prefetch=0,
            grid=grid,
            in_specs=[
                pl.BlockSpec((block_b, N, Dx), lambda b: (b, 0, 0)),
                pl.BlockSpec((block_b, N, De), lambda b: (b, 0, 0)),
                pl.BlockSpec((Dx, 2 * D), lambda b: (0, 0)),
                pl.BlockSpec((De, 2 * D), lambda b: (0, 0)),
            ],
            out_specs=pl.BlockSpec((block_b, N, Dx), lambda b: (b, 0, 0)),
        ),
        compiler_params=pltpu.CompilerParams(
            dimension_semantics=("parallel",),
            vmem_limit_bytes=vmem_limit,
        ),
        cost_estimate=cost,
    )(x_f, e_f, wx, we)


def ctma2_reference(x, e, wq, wk):
    # Pure-JAX mirror of the PyTorch forward (explicit (n,n) logits path), high precision.
    D = wq.shape[0]
    scale = D ** (-0.5)
    hp = jax.lax.Precision.HIGHEST
    x_e = jnp.concatenate([x, e], axis=-1)
    q = jnp.dot(x_e, wq.T, precision=hp)
    k = jnp.dot(x_e, wk.T, precision=hp)
    logits = jnp.einsum('bnd,bmd->bnm', q, k, precision=hp)
    attn = logits * scale          # activation='none', dropout identity
    out = jnp.einsum('bnm,bmt->bnt', attn, x, precision=hp)
    return out + x


if __name__ == "__main__":
    # ---- Test 1: module-consistent small shapes (D = 64 -> zero-padded unaligned path) ----
    B, N, Dx, De = 2, 8, 32, 32
    D = Dx + De
    key = jax.random.PRNGKey(0)
    kx, ke, kq, kk = jax.random.split(key, 4)
    x = jax.random.normal(kx, (B, N, Dx), dtype=jnp.float32)
    e = jax.random.normal(ke, (B, N, De), dtype=jnp.float32)
    # torch nn.Linear weight layout: (out_features, in_features) = (D, D)
    wq = jax.random.normal(kq, (D, D), dtype=jnp.float32) * (D ** -0.5)
    wk = jax.random.normal(kk, (D, D), dtype=jnp.float32) * (D ** -0.5)

    ref = ctma2_reference(x, e, wq, wk)

    out_f32 = jax.block_until_ready(ctma2_forward(x, e, wq, wk, feed_dtype=jnp.float32))
    assert out_f32.shape == (B, N, Dx) and out_f32.dtype == jnp.float32
    assert jnp.allclose(out_f32, ref, atol=3e-2, rtol=3e-2), "f32-feed kernel mismatch vs reference"

    out_bf16 = jax.block_until_ready(ctma2_forward(x, e, wq, wk))  # default bf16 MXU feeds
    assert out_bf16.shape == (B, N, Dx) and out_bf16.dtype == jnp.float32
    assert jnp.allclose(out_bf16, ref, atol=0.4, rtol=0.06), "bf16-feed kernel far from reference"

    # ---- Test 2: D = 128 exercises the lane-aligned q/k split path and block_b > 1 ----
    B2, N2, Dx2, De2 = 4, 16, 64, 64
    D2 = Dx2 + De2
    k2 = jax.random.split(jax.random.PRNGKey(1), 4)
    x2 = jax.random.normal(k2[0], (B2, N2, Dx2), dtype=jnp.float32)
    e2 = jax.random.normal(k2[1], (B2, N2, De2), dtype=jnp.float32)
    wq2 = jax.random.normal(k2[2], (D2, D2), dtype=jnp.float32) * (D2 ** -0.5)
    wk2 = jax.random.normal(k2[3], (D2, D2), dtype=jnp.float32) * (D2 ** -0.5)
    ref2 = ctma2_reference(x2, e2, wq2, wk2)
    out2 = jax.block_until_ready(
        ctma2_forward(x2, e2, wq2, wk2, feed_dtype=jnp.float32, block_b=2))
    assert out2.shape == (B2, N2, Dx2)
    assert jnp.allclose(out2, ref2, atol=3e-2, rtol=3e-2), "aligned-split path mismatch vs reference"

    print("KERNEL_OK")
</pallas_src>

<mosaic_0001>
module attributes {stable_mosaic.version = 11 : i64} {
  func.func @ctma2_kernel(%arg0: i32, %arg1: memref<1x8x32xf32, #tpu.memory_space<vmem>>, %arg2: memref<1x8x32xf32, #tpu.memory_space<vmem>>, %arg3: memref<32x128xf32, #tpu.memory_space<vmem>>, %arg4: memref<32x128xf32, #tpu.memory_space<vmem>>, %arg5: memref<1x8x32xf32, #tpu.memory_space<vmem>>) attributes {dimension_semantics = [#tpu.dimension_semantics<parallel>], iteration_bounds = array<i64: 2>, scalar_prefetch = 0 : i64, scratch_operands = 0 : i64, tpu.core_type = #tpu.core_type<tc>, window_params = [{transform_indices = @transform_0, window_bounds = array<i64: 1, 8, 32>}, {transform_indices = @transform_1, window_bounds = array<i64: 1, 8, 32>}, {pipeline_mode = #tpu.pipeline_mode<synchronous>, transform_indices = @transform_2, window_bounds = array<i64: 32, 128>}, {pipeline_mode = #tpu.pipeline_mode<synchronous>, transform_indices = @transform_3, window_bounds = array<i64: 32, 128>}, {transform_indices = @transform_4, window_bounds = array<i64: 1, 8, 32>}]} {
    %c0 = arith.constant 0 : index
    %c0_0 = arith.constant 0 : index
    %c0_1 = arith.constant 0 : index
    %0 = vector.load %arg1[%c0, %c0_0, %c0_1] : memref<1x8x32xf32, #tpu.memory_space<vmem>>, vector<1x8x32xf32>
    %c0_2 = arith.constant 0 : index
    %c0_3 = arith.constant 0 : index
    %c0_4 = arith.constant 0 : index
    %1 = vector.load %arg2[%c0_2, %c0_3, %c0_4] : memref<1x8x32xf32, #tpu.memory_space<vmem>>, vector<1x8x32xf32>
    %2 = vector.shape_cast %0 : vector<1x8x32xf32> to vector<8x32xf32>
    %3 = vector.shape_cast %1 : vector<1x8x32xf32> to vector<8x32xf32>
    %c0_5 = arith.constant 0 : index
    %c0_6 = arith.constant 0 : index
    %4 = vector.load %arg3[%c0_5, %c0_6] : memref<32x128xf32, #tpu.memory_space<vmem>>, vector<32x128xf32>
    %cst = arith.constant dense<0.000000e+00> : vector<8x128xf32>
    %5 = tpu.matmul %2, %4, %cst {dimension_numbers = #tpu.dot_dimension_numbers<[1], [0], [0], [1], [0, 0, 1, 1], [], []>} : vector<8x32xf32>, vector<32x128xf32>, vector<8x128xf32> -> vector<8x128xf32>
    %c0_7 = arith.constant 0 : index
    %c0_8 = arith.constant 0 : index
    %6 = vector.load %arg4[%c0_7, %c0_8] : memref<32x128xf32, #tpu.memory_space<vmem>>, vector<32x128xf32>
    %cst_9 = arith.constant dense<0.000000e+00> : vector<8x128xf32>
    %7 = tpu.matmul %3, %6, %cst_9 {dimension_numbers = #tpu.dot_dimension_numbers<[1], [0], [0], [1], [0, 0, 1, 1], [], []>} : vector<8x32xf32>, vector<32x128xf32>, vector<8x128xf32> -> vector<8x128xf32>
    %8 = arith.addf %5, %7 : vector<8x128xf32>
    %9 = vector.shape_cast %8 : vector<8x128xf32> to vector<1x8x128xf32>
    "tpu.trace_start"() <{level = 10 : i32, message = "bnc,bnt->bct"}> : () -> ()
    %cst_10 = arith.constant dense<0.000000e+00> : vector<1x128x32xf32>
    %10 = tpu.matmul %9, %0, %cst_10 {dimension_numbers = #tpu.dot_dimension_numbers<[1], [1], [2], [2], [0, 0, 0, 2, 1, 2], [0], [0]>} : vector<1x8x128xf32>, vector<1x8x32xf32>, vector<1x128x32xf32> -> vector<1x128x32xf32>
    "tpu.trace_stop"() : () -> ()
    %11 = vector.extract_strided_slice %10 {offsets = [0, 64, 0], sizes = [1, 64, 32], strides = [1, 1, 1]} : vector<1x128x32xf32> to vector<1x64x32xf32>
    %cst_11 = arith.constant 1.250000e-01 : f32
    %12 = vector.broadcast %cst_11 : f32 to vector<1x64x32xf32>
    %13 = arith.mulf %11, %12 : vector<1x64x32xf32>
    %cst_12 = arith.constant 0.000000e+00 : f32
    %14 = vector.broadcast %cst_12 : f32 to vector<1x64x32xf32>
    %15 = tpu.concatenate %13, %14 in 1 : vector<1x64x32xf32>, vector<1x64x32xf32> -> vector<1x128x32xf32>
    "tpu.trace_start"() <{level = 10 : i32, message = "bnc,bct->bnt"}> : () -> ()
    %cst_13 = arith.constant dense<0.000000e+00> : vector<1x8x32xf32>
    %16 = tpu.matmul %9, %15, %cst_13 {dimension_numbers = #tpu.dot_dimension_numbers<[2], [1], [1], [2], [0, 0, 0, 1, 1, 2], [0], [0]>} : vector<1x8x128xf32>, vector<1x128x32xf32>, vector<1x8x32xf32> -> vector<1x8x32xf32>
    "tpu.trace_stop"() : () -> ()
    %17 = arith.addf %16, %0 : vector<1x8x32xf32>
    %c0_14 = arith.constant 0 : index
    %c0_15 = arith.constant 0 : index
    %c0_16 = arith.constant 0 : index
    %18 = vector.load %arg5[%c0_14, %c0_15, %c0_16] : memref<1x8x32xf32, #tpu.memory_space<vmem>>, vector<1x8x32xf32>
    tpu.vector_store %arg5[%c0_14, %c0_15, %c0_16], %17 {strides = array<i32>} : memref<1x8x32xf32, #tpu.memory_space<vmem>>, vector<1x8x32xf32>,
    return
  }
  func.func @transform_0(%arg0: i32) -> (i32, i32, i32) {
    %c0_i32 = arith.constant 0 : i32
    %c0_i32_0 = arith.constant 0 : i32
    %c0_i32_1 = arith.constant 0 : i32
    return %arg0, %c0_i32, %c0_i32_0 : i32, i32, i32
  }
  func.func @transform_1(%arg0: i32) -> (i32, i32, i32) {
    %c0_i32 = arith.constant 0 : i32
    %c0_i32_0 = arith.constant 0 : i32
    %c0_i32_1 = arith.constant 0 : i32
    return %arg0, %c0_i32, %c0_i32_0 : i32, i32, i32
  }
  func.func @transform_2(%arg0: i32) -> (i32, i32) {
    %c0_i32 = arith.constant 0 : i32
    %c0_i32_0 = arith.constant 0 : i32
    %c0_i32_1 = arith.constant 0 : i32
    return %c0_i32, %c0_i32_0 : i32, i32
  }
  func.func @transform_3(%arg0: i32) -> (i32, i32) {
    %c0_i32 = arith.constant 0 : i32
    %c0_i32_0 = arith.constant 0 : i32
    %c0_i32_1 = arith.constant 0 : i32
    return %c0_i32, %c0_i32_0 : i32, i32
  }
  func.func @transform_4(%arg0: i32) -> (i32, i32, i32) {
    %c0_i32 = arith.constant 0 : i32
    %c0_i32_0 = arith.constant 0 : i32
    %c0_i32_1 = arith.constant 0 : i32
    return %arg0, %c0_i32, %c0_i32_0 : i32, i32, i32
  }
}

</mosaic_0001>

<llo_original>
// kernel: tpu_custom_call.1
$region0: #{tpu_custom_call.1}
  #allocation0 [shape = 'u32[]', space=smem, size = 0x4, offset = 0x4, fixed_abs, tag = 'smem constant byte address 0x4 - core index']
  #allocation1 [shape = 'u32[144,128]{1,0:T(1,128)}', space=vmem, size = 0x12000, scoped, tag = 'internal scratch']
  %s0 = inlined_call_operand.hbm [shape: f32[2,8,32], index: 0, kind: input, shape index: {}]
  %s1 = inlined_call_operand.hbm [shape: f32[2,8,32], index: 1, kind: input, shape index: {}]
  %s2 = inlined_call_operand.hbm [shape: f32[32,128], index: 2, kind: input, shape index: {}]
  %s3 = inlined_call_operand.hbm [shape: f32[32,128], index: 3, kind: input, shape index: {}]
  %s4 = inlined_call_operand.hbm [shape: f32[2,8,32], index: 4, kind: output, shape index: {}]
  %s5 = sld [smem:[#allocation0]]
  $region65: #{tpu_custom_call.1} parent=0
    _
  %s7 = ssub.s32 1, %s5
  %s8 = scalar_select 0, %s7, %s5
  $region1: #{tpu_custom_call.1} parent=0
    #allocation2 [shape = 'u8[8192]{0}', space=vmem, size = 0x2000, scoped, tag = 'input window, operand 0']
    #allocation3 [shape = 's32[2]{0}', space=sflag, size = 0x8, scoped, tag = 'scoped memory for tpu_custom_call.1']
    #allocation4 [shape = 's32[2]{0}', space=sflag, size = 0x8, scoped, tag = 'scoped memory for tpu_custom_call.1']
    #allocation5 [shape = 'u8[8192]{0}', space=vmem, size = 0x2000, scoped, tag = 'input window, operand 1']
    #allocation6 [shape = 's32[2]{0}', space=sflag, size = 0x8, scoped, tag = 'scoped memory for tpu_custom_call.1']
    #allocation7 [shape = 'u8[16384]{0}', space=vmem, size = 0x4000, scoped, tag = 'input window, operand 2, single buffered']
    #allocation8 [shape = 'u8[16384]{0}', space=vmem, size = 0x4000, scoped, tag = 'input window, operand 3, single buffered']
    #allocation9 [shape = 's32[1]{0}', space=sflag, size = 0x4, scoped, tag = 'scoped memory for tpu_custom_call.1']
    #allocation10 [shape = 'u8[8192]{0}', space=vmem, size = 0x2000, scoped, tag = 'output window, operand 0']
    %9 = vsyncpa [#allocation3], 0
    %s10 = scalar_lea.sflag [#allocation3], 1
    %11 = vsyncpa %s10, 0
    %12 = vsyncpa [#allocation6], 0
    %s13 = scalar_lea.sflag [#allocation6], 1
    %14 = vsyncpa %s13, 0
    %15 = vsyncpa [#allocation9], 0
    %16 = vsyncpa [#allocation4], 0
    %s17 = scalar_lea.sflag [#allocation4], 1
    %18 = vsyncpa %s17, 0
    loop: start=0, step=1, limit=4
    $region2: #{tpu_custom_call.1} parent=1 // loop_pre_header
      _
    $region3: #{tpu_custom_call.1} parent=1 // loop_header
      %s20 = sphi 0, %s24
      %p21 = scmp.ge.s32.totalorder %s20, 4
      %s30 = sphi 0, %s32
      %s33 = sphi 0, %s30
      %s34 = sphi 0, %s33
      %s50 = sphi 0, %s34
      %s56 = sphi 0, %s58
      %s59 = sphi 0, %s56
      %s60 = sphi 0, %s59
      %s76 = sphi 0, %s60
      %s80 = sphi 0, %s80
      %s82 = sphi 0, %s80
      %s83 = sphi 0, %s82
      %s97 = sphi 0, %s83
      %s101 = sphi 0, %s101
      %s103 = sphi 0, %s101
      %s104 = sphi 0, %s103
      %s118 = sphi 0, %s104
      %s124 = sphi 0, %s126
      %s127 = sphi 0, %s124
      %s128 = sphi 0, %s127
      %s144 = sphi 0, %s128
    $region4: #{tpu_custom_call.1} parent=1 // loop_header_branch
      %23 = sbr.rel (%p21) target = $region8
    $region5: #{tpu_custom_call.1} parent=1 // loop_body
      %s25 = ssub.s32 %s20, 1
      %s26 = ssub.s32 %s20, 2
      %s27 = sadd.s32 %s20, 1
      %s28 = ssub.s32 %s20, %s27
      %p29 = scmp.eq.s32.totalorder %s28, 0
      %s31 = sadd.s32 %s30, 1
      %s32 = scalar_select %p29, %s30, %s31
      %p35 = pneg %p29
      %p36 = scmp.eq.s32.totalorder %s20, 1
      %p37 = por %p35, %p36
      %p38 = scmp.ne.s32.totalorder %s30, %s33
      %p39 = scmp.eq.s32.totalorder %s20, 0
      %p40 = por %p38, %p39
      %p41 = scmp.ne.s32.totalorder %s30, %s33
      %p42 = scmp.eq.s32.totalorder %s25, 1
      %p43 = por %p41, %p42
      %p44 = scmp.ne.s32.totalorder %s33, %s34
      %p45 = scmp.eq.s32.totalorder %s25, 0
      %p46 = por %p44, %p45
      %p47 = scmp.ne.s32.totalorder %s33, %s34
      %p48 = scmp.eq.s32.totalorder %s26, 1
      %p49 = por %p47, %p48
      %p51 = scmp.ne.s32.totalorder %s34, %s50
      %p52 = scmp.eq.s32.totalorder %s26, 0
      %p53 = por %p51, %p52
      %s54 = ssub.s32 %s20, %s27
      %p55 = scmp.eq.s32.totalorder %s54, 0
      %s57 = sadd.s32 %s56, 1
      %s58 = scalar_select %p55, %s56, %s57
      %p61 = pneg %p55
      %p62 = scmp.eq.s32.totalorder %s20, 1
      %p63 = por %p61, %p62
      %p64 = scmp.ne.s32.totalorder %s56, %s59
      %p65 = scmp.eq.s32.totalorder %s20, 0
      %p66 = por %p64, %p65
      %p67 = scmp.ne.s32.totalorder %s56, %s59
      %p68 = scmp.eq.s32.totalorder %s25, 1
      %p69 = por %p67, %p68
      %p70 = scmp.ne.s32.totalorder %s59, %s60
      %p71 = scmp.eq.s32.totalorder %s25, 0
      %p72 = por %p70, %p71
      %p73 = scmp.ne.s32.totalorder %s59, %s60
      %p74 = scmp.eq.s32.totalorder %s26, 1
      %p75 = por %p73, %p74
      %p77 = scmp.ne.s32.totalorder %s60, %s76
      %p78 = scmp.eq.s32.totalorder %s26, 0
      %p79 = por %p77, %p78
      %s81 = sadd.s32 %s80, 1
      %p84 = scmp.eq.s32.totalorder %s20, 1
      %p85 = scmp.ne.s32.totalorder %s80, %s82
      %p86 = scmp.eq.s32.totalorder %s20, 0
      %p87 = por %p85, %p86
      %p88 = scmp.ne.s32.totalorder %s80, %s82
      %p89 = scmp.eq.s32.totalorder %s25, 1
      %p90 = por %p88, %p89
      %p91 = scmp.ne.s32.totalorder %s82, %s83
      %p92 = scmp.eq.s32.totalorder %s25, 0
      %p93 = por %p91, %p92
      %p94 = scmp.ne.s32.totalorder %s82, %s83
      %p95 = scmp.eq.s32.totalorder %s26, 1
      %p96 = por %p94, %p95
      %p98 = scmp.ne.s32.totalorder %s83, %s97
      %p99 = scmp.eq.s32.totalorder %s26, 0
      %p100 = por %p98, %p99
      %s102 = sadd.s32 %s101, 1
      %p105 = scmp.eq.s32.totalorder %s20, 1
      %p106 = scmp.ne.s32.totalorder %s101, %s103
      %p107 = scmp.eq.s32.totalorder %s20, 0
      %p108 = por %p106, %p107
      %p109 = scmp.ne.s32.totalorder %s101, %s103
      %p110 = scmp.eq.s32.totalorder %s25, 1
      %p111 = por %p109, %p110
      %p112 = scmp.ne.s32.totalorder %s103, %s104
      %p113 = scmp.eq.s32.totalorder %s25, 0
      %p114 = por %p112, %p113
      %p115 = scmp.ne.s32.totalorder %s103, %s104
      %p116 = scmp.eq.s32.totalorder %s26, 1
      %p117 = por %p115, %p116
      %p119 = scmp.ne.s32.totalorder %s104, %s118
      %p120 = scmp.eq.s32.totalorder %s26, 0
      %p121 = por %p119, %p120
      %s122 = ssub.s32 %s20, %s27
      %p123 = scmp.eq.s32.totalorder %s122, 0
      %s125 = sadd.s32 %s124, 1
      %s126 = scalar_select %p123, %s124, %s125
      %p129 = pneg %p123
      %p130 = scmp.eq.s32.totalorder %s20, 1
      %p131 = por %p129, %p130
      %p132 = scmp.ne.s32.totalorder %s124, %s127
      %p133 = scmp.eq.s32.totalorder %s20, 0
      %p134 = por %p132, %p133
      %p135 = scmp.ne.s32.totalorder %s124, %s127
      %p136 = scmp.eq.s32.totalorder %s25, 1
      %p137 = por %p135, %p136
      %p138 = scmp.ne.s32.totalorder %s127, %s128
      %p139 = scmp.eq.s32.totalorder %s25, 0
      %p140 = por %p138, %p139
      %p141 = scmp.ne.s32.totalorder %s127, %s128
      %p142 = scmp.eq.s32.totalorder %s26, 1
      %p143 = por %p141, %p142
      %p145 = scmp.ne.s32.totalorder %s128, %s144
      %p146 = scmp.eq.s32.totalorder %s26, 0
      %p147 = por %p145, %p146
      %p148 = scmp.le.s32.totalorder 1, %s20
      %p149 = scmp.lt.s32.totalorder %s20, 3
      %p150 = pnand %p148, %p149
      %p151 = pneg %p150
      // Predicated region
      $region9: #{tpu_custom_call.1} parent=5 // pred_check
        _
      $region10: #{tpu_custom_call.1} parent=5 // pred_check_branch
        %153 = sbr.rel (%p150) target = $region12
      $region11: #{tpu_custom_call.1} parent=5 // pred_region
        %s154 = ssub.s32 %s20, 1
        // Predicated region
        $region13: #{tpu_custom_call.1} parent=11 // pred_check
          %p155 = pneg %p93
        $region14: #{tpu_custom_call.1} parent=11 // pred_check_branch
          %157 = sbr.rel (%p155) target = $region16
        $region15: #{tpu_custom_call.1} parent=11 // pred_region
          %s159 = ssub.s32 512, 512
          %160 = vsyncadd [#allocation6], %s159
          %s161 = sshll.u32 [#allocation7], 4
          %s162 = int_to_ptr.vmem [resolvable:$true] %s161
          %167 = dma.hbm_to_vmem [thread:$0]  %s2, 512, %s162, [#allocation6], 128, 128, 8
        $region16: #{tpu_custom_call.1} parent=11 // pred_fallthru
          _
        // Predicated region
        $region17: #{tpu_custom_call.1} parent=11 // pred_check
          %p168 = pneg %p114
        $region18: #{tpu_custom_call.1} parent=11 // pred_check_branch
          %170 = sbr.rel (%p168) target = $region20
        $region19: #{tpu_custom_call.1} parent=11 // pred_region
          %s172 = ssub.s32 512, 512
          %173 = vsyncadd [#allocation9], %s172
          %s174 = sshll.u32 [#allocation8], 4
          %s175 = int_to_ptr.vmem [resolvable:$true] %s174
          %180 = dma.hbm_to_vmem [thread:$0]  %s3, 512, %s175, [#allocation9], 128, 128, 8
        $region20: #{tpu_custom_call.1} parent=11 // pred_fallthru
          _
      $region12: #{tpu_custom_call.1} parent=5 // pred_fallthru
        _
      %p181 = scmp.lt.s32.totalorder %s20, 2
      // Predicated region
      $region21: #{tpu_custom_call.1} parent=5 // pred_check
        %p182 = pneg %p181
      $region22: #{tpu_custom_call.1} parent=5 // pred_check_branch
        %184 = sbr.rel (%p182) target = $region24
      $region23: #{tpu_custom_call.1} parent=5 // pred_region
        // Predicated region
        $region25: #{tpu_custom_call.1} parent=23 // pred_check
          %p185 = pneg %p40
        $region26: #{tpu_custom_call.1} parent=23 // pred_check_branch
          %187 = sbr.rel (%p185) target = $region28
        $region27: #{tpu_custom_call.1} parent=23 // pred_region
          %s188 = sand.u32 %s30, 1
          %s189 = scalar_lea.sflag [#allocation3], %s188
          %s190 = sand.u32 %s30, 1
          %s191 = smul.addr %s190, 8
          %s192 = scalar_lea.vmem [#allocation2], %s191
          %s194 = ssub.s32 128, 128
          %195 = vsyncadd %s189, %s194
          %s196 = smul.addr %s20, 128
          %s197 = scalar_lea.hbm %s0, %s196
          %s199 = sshll.u32 %s192, 4
          %s200 = int_to_ptr.vmem [resolvable:$true] %s199
          %202 = dma.hbm_to_vmem [thread:$0]  %s197, 128, %s200, %s189
        $region28: #{tpu_custom_call.1} parent=23 // pred_fallthru
          _
        // Predicated region
        $region29: #{tpu_custom_call.1} parent=23 // pred_check
          %p203 = pneg %p66
        $region30: #{tpu_custom_call.1} parent=23 // pred_check_branch
          %205 = sbr.rel (%p203) target = $region32
        $region31: #{tpu_custom_call.1} parent=23 // pred_region
          %s206 = sand.u32 %s20, 1
          %s207 = scalar_lea.sflag [#allocation6], %s206
          %s208 = sand.u32 %s56, 1
          %s209 = smul.addr %s208, 8
          %s210 = scalar_lea.vmem [#allocation5], %s209
          %s212 = ssub.s32 128, 128
          %213 = vsyncadd %s207, %s212
          %s214 = smul.addr %s20, 128
          %s215 = scalar_lea.hbm %s1, %s214
          %s217 = sshll.u32 %s210, 4
          %s218 = int_to_ptr.vmem [resolvable:$true] %s217
          %220 = dma.hbm_to_vmem [thread:$0]  %s215, 128, %s218, %s207
        $region32: #{tpu_custom_call.1} parent=23 // pred_fallthru
          _
      $region24: #{tpu_custom_call.1} parent=5 // pred_fallthru
        _
      %p221 = scmp.le.s32.totalorder 1, %s20
      %p222 = scmp.lt.s32.totalorder %s20, 3
      %p223 = pnand %p221, %p222
      %p224 = pneg %p223
      // Predicated region
      $region33: #{tpu_custom_call.1} parent=5 // pred_check
        _
      $region34: #{tpu_custom_call.1} parent=5 // pred_check_branch
        %226 = sbr.rel (%p223) target = $region36
      $region35: #{tpu_custom_call.1} parent=5 // pred_region
        %s227 = ssub.s32 %s20, 1
        %s228 = sand.u32 %s33, 1
        %s229 = scalar_lea.sflag [#allocation3], %s228
        %s230 = sand.u32 %s33, 1
        %s231 = smul.addr %s230, 8
        %s232 = scalar_lea.vmem [#allocation2], %s231
        // Predicated region
        $region37: #{tpu_custom_call.1} parent=35 // pred_check
          %p233 = pneg %p46
        $region38: #{tpu_custom_call.1} parent=35 // pred_check_branch
          %235 = sbr.rel (%p233) target = $region40
        $region39: #{tpu_custom_call.1} parent=35 // pred_region
          %236 = dma.done %s229, 128
        $region40: #{tpu_custom_call.1} parent=35 // pred_fallthru
          _
        %s237 = sand.u32 %s25, 1
        %s238 = scalar_lea.sflag [#allocation6], %s237
        %s239 = sand.u32 %s59, 1
        %s240 = smul.addr %s239, 8
        %s241 = scalar_lea.vmem [#allocation5], %s240
        // Predicated region
        $region41: #{tpu_custom_call.1} parent=35 // pred_check
          %p242 = pneg %p72
        $region42: #{tpu_custom_call.1} parent=35 // pred_check_branch
          %244 = sbr.rel (%p242) target = $region44
        $region43: #{tpu_custom_call.1} parent=35 // pred_region
          %245 = dma.done %s238, 128
        $region44: #{tpu_custom_call.1} parent=35 // pred_fallthru
          _
        // Predicated region
        $region45: #{tpu_custom_call.1} parent=35 // pred_check
          %p246 = pneg %p93
        $region46: #{tpu_custom_call.1} parent=35 // pred_check_branch
          %248 = sbr.rel (%p246) target = $region48
        $region47: #{tpu_custom_call.1} parent=35 // pred_region
          %249 = dma.done [#allocation6], 512
        $region48: #{tpu_custom_call.1} parent=35 // pred_fallthru
          _
        // Predicated region
        $region49: #{tpu_custom_call.1} parent=35 // pred_check
          %p250 = pneg %p114
        $region50: #{tpu_custom_call.1} parent=35 // pred_check_branch
          %252 = sbr.rel (%p250) target = $region52
        $region51: #{tpu_custom_call.1} parent=35 // pred_region
          %253 = dma.done [#allocation9], 512
        $region52: #{tpu_custom_call.1} parent=35 // pred_fallthru
          _
        %s254 = sand.u32 %s33, 1
        %s255 = scalar_lea.sflag [#allocation3], %s254
        %s256 = sand.u32 %s33, 1
        %s257 = smul.addr %s256, 8
        %s258 = scalar_lea.vmem [#allocation2], %s257
        %p259 = pneg %p46
        %p260 = pneg %p43
        %s261 = sand.u32 %s25, 1
        %s262 = scalar_lea.sflag [#allocation6], %s261
        %s263 = sand.u32 %s59, 1
        %s264 = smul.addr %s263, 8
        %s265 = scalar_lea.vmem [#allocation5], %s264
        %p266 = pneg %p72
        %p267 = pneg %p69
        %p268 = pneg %p93
        %p269 = pneg %p90
        %p270 = pneg %p114
        %p271 = pneg %p111
        %p272 = pneg %p140
        %p273 = pneg %p137
        %s274 = sand.u32 %s127, 1
        %s275 = scalar_lea.sflag [#allocation4], %s274
        %s276 = sand.u32 %s127, 1
        %s277 = smul.addr %s276, 8
        %s278 = scalar_lea.vmem [#allocation10], %s277
        %v279 = vld [vmem:[%s232] sm:$0xff]
        %v280 = vld [vmem:[%s241] sm:$0xff]
        %v281 = vld [vmem:[#allocation7] sm:$0xff]
        %v282 = vld [vmem:[#allocation7 + $0x8] sm:$0xff]
        %v283 = vld [vmem:[#allocation7 + $0x10] sm:$0xff]
        %v284 = vld [vmem:[#allocation7 + $0x18] sm:$0xff]
        %v285 = vld [vmem:[#allocation8] sm:$0xff]
        %v286 = vld [vmem:[#allocation8 + $0x8] sm:$0xff]
        %v287 = vld [vmem:[#allocation8 + $0x10] sm:$0xff]
        %v288 = vld [vmem:[#allocation8 + $0x18] sm:$0xff]
        %vm289 = vcmask 261120
        %v291 = vsel %vm289, %v280, 0
        %293 = vmatprep.subr.mxu0 0.0
        %294 = vmatpush1.msra.mxu0 %v285
        %295 = vmatprep.subr.mxu0 0.0
        %296 = vmatpush1.msra.mxu0 %v286
        %297 = vmatprep.subr.mxu0 0.0
        %298 = vmatpush1.msra.mxu0 %v287
        %299 = vmatprep.subr.mxu0 0.0
        %300 = vmatpush1.msra.mxu0 %v288
        %301 = vmatprep.subr.mxu0 0.0
        %302 = vmatpush1.msra.mxu0 0.0
        %303 = vmatprep.subr.mxu0 0.0
        %304 = vmatpush1.msra.mxu0 0.0
        %305 = vmatprep.subr.mxu0 0.0
        %306 = vmatpush1.msra.mxu0 0.0
        %307 = vmatprep.subr.mxu0 0.0
        %308 = vmatpush1.msra.mxu0 0.0
        %309 = vmatprep.subr.mxu0 0.0
        %310 = vmatpush1.msra.mxu0 0.0
        %311 = vmatprep.subr.mxu0 0.0
        %312 = vmatpush1.msra.mxu0 0.0
        %313 = vmatprep.subr.mxu0 0.0
        %314 = vmatpush1.msra.mxu0 0.0
        %315 = vmatprep.subr.mxu0 0.0
        %316 = vmatpush1.msra.mxu0 0.0
        %317 = vmatprep.subr.mxu0 0.0
        %318 = vmatpush1.msra.mxu0 0.0
        %319 = vmatprep.subr.mxu0 0.0
        %320 = vmatpush1.msra.mxu0 0.0
        %321 = vmatprep.subr.mxu0 0.0
        %322 = vmatpush1.msra.mxu0 0.0
        %323 = vmatprep.subr.mxu0 0.0
        %324 = vmatpush1.msra.mxu0 0.0
        %325 = vmatprep.subr.mxu0 0.0
        %326 = vmatpush1.msra.mxu0 0.0
        %327 = vmatprep.subr.mxu0 0.0
        %328 = vmatpush1.msra.mxu0 0.0
        %329 = vmatprep.subr.mxu0 0.0
        %330 = vmatpush1.msra.mxu0 0.0
        %331 = vmatprep.subr.mxu0 0.0
        %332 = vmatpush1.msra.mxu0 0.0
        %333 = vmatprep.subr.mxu0 0.0
        %334 = vmatpush1.msra.mxu0 0.0
        %335 = vmatprep.subr.mxu0 0.0
        %336 = vmatpush1.msra.mxu0 0.0
        %337 = vmatprep.subr.mxu0 0.0
        %338 = vmatpush1.msra.mxu0 0.0
        %339 = vmatprep.subr.mxu0 0.0
        %340 = vmatpush1.msra.mxu0 0.0
        %341 = vmatprep.subr.mxu0 0.0
        %342 = vmatpush1.msra.mxu0 0.0
        %343 = vmatprep.subr.mxu0 0.0
        %344 = vmatpush1.msra.mxu0 0.0
        %345 = vmatprep.subr.mxu0 0.0
        %346 = vmatpush1.msra.mxu0 0.0
        %347 = vmatprep.subr.mxu0 0.0
        %348 = vmatpush1.msra.mxu0 0.0
        %349 = vmatprep.subr.mxu0 0.0
        %350 = vmatpush1.msra.mxu0 0.0
        %351 = vmatprep.subr.mxu0 0.0
        %352 = vmatpush1.msra.mxu0 0.0
        %353 = vmatprep.subr.mxu0 0.0
        %354 = vmatpush1.msra.mxu0 0.0
        %355 = vmatprep.subr.mxu0 0.0
        %356 = vmatpush1.msra.mxu0 0.0
        %357 = vmatprep.mubr.f32.mxu0 0.0
        %358 = vmatmul.mubr.f32.gmra.mrb[0].mxu0 %v291
        %v359 = vpop.f32.mrb[0].mxu0
        %v360 = vadd.f32 0.0, %v359
        %v361 = vpop.f32.mrb[0].mxu0
        %362 = vdwg.mxu0
        %v364 = vsel %vm289, %v279, 0
        %366 = vmatprep.subr.mxu0 0.0
        %367 = vmatpush1.msra.mxu0 %v281
        %368 = vmatprep.subr.mxu0 0.0
        %369 = vmatpush1.msra.mxu0 %v282
        %370 = vmatprep.subr.mxu0 0.0
        %371 = vmatpush1.msra.mxu0 %v283
        %372 = vmatprep.subr.mxu0 0.0
        %373 = vmatpush1.msra.mxu0 %v284
        %374 = vmatprep.subr.mxu0 0.0
        %375 = vmatpush1.msra.mxu0 0.0
        %376 = vmatprep.subr.mxu0 0.0
        %377 = vmatpush1.msra.mxu0 0.0
        %378 = vmatprep.subr.mxu0 0.0
        %379 = vmatpush1.msra.mxu0 0.0
        %380 = vmatprep.subr.mxu0 0.0
        %381 = vmatpush1.msra.mxu0 0.0
        %382 = vmatprep.subr.mxu0 0.0
        %383 = vmatpush1.msra.mxu0 0.0
        %384 = vmatprep.subr.mxu0 0.0
        %385 = vmatpush1.msra.mxu0 0.0
        %386 = vmatprep.subr.mxu0 0.0
        %387 = vmatpush1.msra.mxu0 0.0
        %388 = vmatprep.subr.mxu0 0.0
        %389 = vmatpush1.msra.mxu0 0.0
        %390 = vmatprep.subr.mxu0 0.0
        %391 = vmatpush1.msra.mxu0 0.0
        %392 = vmatprep.subr.mxu0 0.0
        %393 = vmatpush1.msra.mxu0 0.0
        %394 = vmatprep.subr.mxu0 0.0
        %395 = vmatpush1.msra.mxu0 0.0
        %396 = vmatprep.subr.mxu0 0.0
        %397 = vmatpush1.msra.mxu0 0.0
        %398 = vmatprep.subr.mxu0 0.0
        %399 = vmatpush1.msra.mxu0 0.0
        %400 = vmatprep.subr.mxu0 0.0
        %401 = vmatpush1.msra.mxu0 0.0
        %402 = vmatprep.subr.mxu0 0.0
        %403 = vmatpush1.msra.mxu0 0.0
        %404 = vmatprep.subr.mxu0 0.0
        %405 = vmatpush1.msra.mxu0 0.0
        %406 = vmatprep.subr.mxu0 0.0
        %407 = vmatpush1.msra.mxu0 0.0
        %408 = vmatprep.subr.mxu0 0.0
        %409 = vmatpush1.msra.mxu0 0.0
        %410 = vmatprep.subr.mxu0 0.0
        %411 = vmatpush1.msra.mxu0 0.0
        %412 = vmatprep.subr.mxu0 0.0
        %413 = vmatpush1.msra.mxu0 0.0
        %414 = vmatprep.subr.mxu0 0.0
        %415 = vmatpush1.msra.mxu0 0.0
        %416 = vmatprep.subr.mxu0 0.0
        %417 = vmatpush1.msra.mxu0 0.0
        %418 = vmatprep.subr.mxu0 0.0
        %419 = vmatpush1.msra.mxu0 0.0
        %420 = vmatprep.subr.mxu0 0.0
        %421 = vmatpush1.msra.mxu0 0.0
        %422 = vmatprep.subr.mxu0 0.0
        %423 = vmatpush1.msra.mxu0 0.0
        %424 = vmatprep.subr.mxu0 0.0
        %425 = vmatpush1.msra.mxu0 0.0
        %426 = vmatprep.subr.mxu0 0.0
        %427 = vmatpush1.msra.mxu0 0.0
        %428 = vmatprep.subr.mxu0 0.0
        %429 = vmatpush1.msra.mxu0 0.0
        %430 = vmatprep.mubr.f32.mxu0 0.0
        %431 = vmatmul.mubr.f32.gmra.mrb[0].mxu0 %v364
        %v432 = vpop.f32.mrb[0].mxu0
        %v433 = vadd.f32 %v360, %v432
        %v434 = vpop.f32.mrb[0].mxu0
        %435 = vdwg.mxu0
        %436 = vxpose.xlu0.b32.start [1/16] %v433, 128
        %437 = vxpose.xlu0.b32.cont [2/16] 0.0, 128
        %438 = vxpose.xlu0.b32.cont [3/16] 0.0, 128
        %439 = vxpose.xlu0.b32.cont [4/16] 0.0, 128
        %440 = vxpose.xlu0.b32.cont [5/16] 0.0, 128
        %441 = vxpose.xlu0.b32.cont [6/16] 0.0, 128
        %442 = vxpose.xlu0.b32.cont [7/16] 0.0, 128
        %443 = vxpose.xlu0.b32.cont [8/16] 0.0, 128
        %444 = vxpose.xlu0.b32.cont [9/16] 0.0, 128
        %445 = vxpose.xlu0.b32.cont [10/16] 0.0, 128
        %446 = vxpose.xlu0.b32.cont [11/16] 0.0, 128
        %447 = vxpose.xlu0.b32.cont [12/16] 0.0, 128
        %448 = vxpose.xlu0.b32.cont [13/16] 0.0, 128
        %449 = vxpose.xlu0.b32.cont [14/16] 0.0, 128
        %450 = vxpose.xlu0.b32.cont [15/16] 0.0, 128
        %451 = vxpose.xlu0.b32.end [16/16] 0.0, 128
        %v452 = vpop.trf.xlu0
        %v453 = vpop.trf.xlu0
        %v454 = vpop.trf.xlu0
        %v455 = vpop.trf.xlu0
        %v456 = vpop.trf.xlu0
        %v457 = vpop.trf.xlu0
        %v458 = vpop.trf.xlu0
        %v459 = vpop.trf.xlu0
        %v460 = vpop.trf.xlu0
        %v461 = vpop.trf.xlu0
        %v462 = vpop.trf.xlu0
        %v463 = vpop.trf.xlu0
        %v464 = vpop.trf.xlu0
        %v465 = vpop.trf.xlu0
        %v466 = vpop.trf.xlu0
        %v467 = vpop.trf.xlu0
        %vm468 = vcmask 64512
        %v470 = vsel %vm468, %v452, 0
        %v473 = vsel %vm468, %v453, 0
        %v476 = vsel %vm468, %v454, 0
        %v479 = vsel %vm468, %v455, 0
        %v482 = vsel %vm468, %v456, 0
        %v485 = vsel %vm468, %v457, 0
        %v488 = vsel %vm468, %v458, 0
        %v491 = vsel %vm468, %v459, 0
        %v494 = vsel %vm468, %v460, 0
        %v497 = vsel %vm468, %v461, 0
        %v500 = vsel %vm468, %v462, 0
        %v503 = vsel %vm468, %v463, 0
        %v506 = vsel %vm468, %v464, 0
        %v509 = vsel %vm468, %v465, 0
        %v512 = vsel %vm468, %v466, 0
        %v515 = vsel %vm468, %v467, 0
        %517 = vmatprep.subr.mxu0 0.0
        %518 = vmatpush1.msra.mxu0 %v279
        %519 = vmatprep.subr.mxu0 0.0
        %520 = vmatpush1.msra.mxu0 0.0
        %521 = vmatprep.subr.mxu0 0.0
        %522 = vmatpush1.msra.mxu0 0.0
        %523 = vmatprep.subr.mxu0 0.0
        %524 = vmatpush1.msra.mxu0 0.0
        %525 = vmatprep.subr.mxu0 0.0
        %526 = vmatpush1.msra.mxu0 0.0
        %527 = vmatprep.subr.mxu0 0.0
        %528 = vmatpush1.msra.mxu0 0.0
        %529 = vmatprep.subr.mxu0 0.0
        %530 = vmatpush1.msra.mxu0 0.0
        %531 = vmatprep.subr.mxu0 0.0
        %532 = vmatpush1.msra.mxu0 0.0
        %533 = vmatprep.subr.mxu0 0.0
        %534 = vmatpush1.msra.mxu0 0.0
        %535 = vmatprep.subr.mxu0 0.0
        %536 = vmatpush1.msra.mxu0 0.0
        %537 = vmatprep.subr.mxu0 0.0
        %538 = vmatpush1.msra.mxu0 0.0
        %539 = vmatprep.subr.mxu0 0.0
        %540 = vmatpush1.msra.mxu0 0.0
        %541 = vmatprep.subr.mxu0 0.0
        %542 = vmatpush1.msra.mxu0 0.0
        %543 = vmatprep.subr.mxu0 0.0
        %544 = vmatpush1.msra.mxu0 0.0
        %545 = vmatprep.subr.mxu0 0.0
        %546 = vmatpush1.msra.mxu0 0.0
        %547 = vmatprep.subr.mxu0 0.0
        %548 = vmatpush1.msra.mxu0 0.0
        %549 = vmatprep.subr.mxu0 0.0
        %550 = vmatpush1.msra.mxu0 0.0
        %551 = vmatprep.subr.mxu0 0.0
        %552 = vmatpush1.msra.mxu0 0.0
        %553 = vmatprep.subr.mxu0 0.0
        %554 = vmatpush1.msra.mxu0 0.0
        %555 = vmatprep.subr.mxu0 0.0
        %556 = vmatpush1.msra.mxu0 0.0
        %557 = vmatprep.subr.mxu0 0.0
        %558 = vmatpush1.msra.mxu0 0.0
        %559 = vmatprep.subr.mxu0 0.0
        %560 = vmatpush1.msra.mxu0 0.0
        %561 = vmatprep.subr.mxu0 0.0
        %562 = vmatpush1.msra.mxu0 0.0
        %563 = vmatprep.subr.mxu0 0.0
        %564 = vmatpush1.msra.mxu0 0.0
        %565 = vmatprep.subr.mxu0 0.0
        %566 = vmatpush1.msra.mxu0 0.0
        %567 = vmatprep.subr.mxu0 0.0
        %568 = vmatpush1.msra.mxu0 0.0
        %569 = vmatprep.subr.mxu0 0.0
        %570 = vmatpush1.msra.mxu0 0.0
        %571 = vmatprep.subr.mxu0 0.0
        %572 = vmatpush1.msra.mxu0 0.0
        %573 = vmatprep.subr.mxu0 0.0
        %574 = vmatpush1.msra.mxu0 0.0
        %575 = vmatprep.subr.mxu0 0.0
        %576 = vmatpush1.msra.mxu0 0.0
        %577 = vmatprep.subr.mxu0 0.0
        %578 = vmatpush1.msra.mxu0 0.0
        %579 = vmatprep.subr.mxu0 0.0
        %580 = vmatpush1.msra.mxu0 0.0
        %581 = vmatprep.mubr.f32.mxu0 0.0
        %582 = vmatmul.mubr.f32.gmra.mrb[0].mxu0 %v470
        %v583 = vpop.f32.mrb[0].mxu0
        %v584 = vpop.f32.mrb[0].mxu0
        %585 = vmatprep.mubr.f32.mxu0 0.0
        %586 = vmatmul.mubr.f32.gmra.mrb[0].mxu0 %v473
        %v587 = vpop.f32.mrb[0].mxu0
        %v588 = vpop.f32.mrb[0].mxu0
        %589 = vmatprep.mubr.f32.mxu0 0.0
        %590 = vmatmul.mubr.f32.gmra.mrb[0].mxu0 %v476
        %v591 = vpop.f32.mrb[0].mxu0
        %v592 = vpop.f32.mrb[0].mxu0
        %593 = vmatprep.mubr.f32.mxu0 0.0
        %594 = vmatmul.mubr.f32.gmra.mrb[0].mxu0 %v479
        %v595 = vpop.f32.mrb[0].mxu0
        %v596 = vpop.f32.mrb[0].mxu0
        %597 = vmatprep.mubr.f32.mxu0 0.0
        %598 = vmatmul.mubr.f32.gmra.mrb[0].mxu0 %v482
        %v599 = vpop.f32.mrb[0].mxu0
        %v600 = vpop.f32.mrb[0].mxu0
        %601 = vmatprep.mubr.f32.mxu0 0.0
        %602 = vmatmul.mubr.f32.gmra.mrb[0].mxu0 %v485
        %v603 = vpop.f32.mrb[0].mxu0
        %v604 = vpop.f32.mrb[0].mxu0
        %605 = vmatprep.mubr.f32.mxu0 0.0
        %606 = vmatmul.mubr.f32.gmra.mrb[0].mxu0 %v488
        %v607 = vpop.f32.mrb[0].mxu0
        %v608 = vpop.f32.mrb[0].mxu0
        %609 = vmatprep.mubr.f32.mxu0 0.0
        %610 = vmatmul.mubr.f32.gmra.mrb[0].mxu0 %v491
        %v611 = vpop.f32.mrb[0].mxu0
        %v612 = vpop.f32.mrb[0].mxu0
        %613 = vmatprep.mubr.f32.mxu0 0.0
        %614 = vmatmul.mubr.f32.gmra.mrb[0].mxu0 %v494
        %v615 = vpop.f32.mrb[0].mxu0
        %v616 = vadd.f32 0.0, %v615
        %v617 = vpop.f32.mrb[0].mxu0
        %618 = vmatprep.mubr.f32.mxu0 0.0
        %619 = vmatmul.mubr.f32.gmra.mrb[0].mxu0 %v497
        %v620 = vpop.f32.mrb[0].mxu0
        %v621 = vadd.f32 0.0, %v620
        %v622 = vpop.f32.mrb[0].mxu0
        %623 = vmatprep.mubr.f32.mxu0 0.0
        %624 = vmatmul.mubr.f32.gmra.mrb[0].mxu0 %v500
        %v625 = vpop.f32.mrb[0].mxu0
        %v626 = vadd.f32 0.0, %v625
        %v627 = vpop.f32.mrb[0].mxu0
        %628 = vmatprep.mubr.f32.mxu0 0.0
        %629 = vmatmul.mubr.f32.gmra.mrb[0].mxu0 %v503
        %v630 = vpop.f32.mrb[0].mxu0
        %v631 = vadd.f32 0.0, %v630
        %v632 = vpop.f32.mrb[0].mxu0
        %633 = vmatprep.mubr.f32.mxu0 0.0
        %634 = vmatmul.mubr.f32.gmra.mrb[0].mxu0 %v506
        %v635 = vpop.f32.mrb[0].mxu0
        %v636 = vadd.f32 0.0, %v635
        %v637 = vpop.f32.mrb[0].mxu0
        %638 = vmatprep.mubr.f32.mxu0 0.0
        %639 = vmatmul.mubr.f32.gmra.mrb[0].mxu0 %v509
        %v640 = vpop.f32.mrb[0].mxu0
        %v641 = vadd.f32 0.0, %v640
        %v642 = vpop.f32.mrb[0].mxu0
        %643 = vmatprep.mubr.f32.mxu0 0.0
        %644 = vmatmul.mubr.f32.gmra.mrb[0].mxu0 %v512
        %v645 = vpop.f32.mrb[0].mxu0
        %v646 = vadd.f32 0.0, %v645
        %v647 = vpop.f32.mrb[0].mxu0
        %648 = vmatprep.mubr.f32.mxu0 0.0
        %649 = vmatmul.mubr.f32.gmra.mrb[0].mxu0 %v515
        %v650 = vpop.f32.mrb[0].mxu0
        %v651 = vadd.f32 0.0, %v650
        %v652 = vpop.f32.mrb[0].mxu0
        %653 = vdwg.mxu0
        %v654 = vmul.f32 %v616, 0.125
        %v655 = vmul.f32 %v621, 0.125
        %v656 = vmul.f32 %v626, 0.125
        %v657 = vmul.f32 %v631, 0.125
        %v658 = vmul.f32 %v636, 0.125
        %v659 = vmul.f32 %v641, 0.125
        %v660 = vmul.f32 %v646, 0.125
        %v661 = vmul.f32 %v651, 0.125
        %662 = vmatprep.subr.mxu0 0.0
        %663 = vmatpush1.msra.mxu0 %v654
        %664 = vmatprep.subr.mxu0 0.0
        %665 = vmatpush1.msra.mxu0 %v655
        %666 = vmatprep.subr.mxu0 0.0
        %667 = vmatpush1.msra.mxu0 %v656
        %668 = vmatprep.subr.mxu0 0.0
        %669 = vmatpush1.msra.mxu0 %v657
        %670 = vmatprep.subr.mxu0 0.0
        %671 = vmatpush1.msra.mxu0 %v658
        %672 = vmatprep.subr.mxu0 0.0
        %673 = vmatpush1.msra.mxu0 %v659
        %674 = vmatprep.subr.mxu0 0.0
        %675 = vmatpush1.msra.mxu0 %v660
        %676 = vmatprep.subr.mxu0 0.0
        %677 = vmatpush1.msra.mxu0 %v661
        %678 = vmatprep.subr.mxu0 0.0
        %679 = vmatpush1.msra.mxu0 0.0
        %680 = vmatprep.subr.mxu0 0.0
        %681 = vmatpush1.msra.mxu0 0.0
        %682 = vmatprep.subr.mxu0 0.0
        %683 = vmatpush1.msra.mxu0 0.0
        %684 = vmatprep.subr.mxu0 0.0
        %685 = vmatpush1.msra.mxu0 0.0
        %686 = vmatprep.subr.mxu0 0.0
        %687 = vmatpush1.msra.mxu0 0.0
        %688 = vmatprep.subr.mxu0 0.0
        %689 = vmatpush1.msra.mxu0 0.0
        %690 = vmatprep.subr.mxu0 0.0
        %691 = vmatpush1.msra.mxu0 0.0
        %692 = vmatprep.subr.mxu0 0.0
        %693 = vmatpush1.msra.mxu0 0.0
        %694 = vmatprep.subr.mxu0 0.0
        %695 = vmatpush1.msra.mxu0 0.0
        %696 = vmatprep.subr.mxu0 0.0
        %697 = vmatpush1.msra.mxu0 0.0
        %698 = vmatprep.subr.mxu0 0.0
        %699 = vmatpush1.msra.mxu0 0.0
        %700 = vmatprep.subr.mxu0 0.0
        %701 = vmatpush1.msra.mxu0 0.0
        %702 = vmatprep.subr.mxu0 0.0
        %703 = vmatpush1.msra.mxu0 0.0
        %704 = vmatprep.subr.mxu0 0.0
        %705 = vmatpush1.msra.mxu0 0.0
        %706 = vmatprep.subr.mxu0 0.0
        %707 = vmatpush1.msra.mxu0 0.0
        %708 = vmatprep.subr.mxu0 0.0
        %709 = vmatpush1.msra.mxu0 0.0
        %710 = vmatprep.subr.mxu0 0.0
        %711 = vmatpush1.msra.mxu0 0.0
        %712 = vmatprep.subr.mxu0 0.0
        %713 = vmatpush1.msra.mxu0 0.0
        %714 = vmatprep.subr.mxu0 0.0
        %715 = vmatpush1.msra.mxu0 0.0
        %716 = vmatprep.subr.mxu0 0.0
        %717 = vmatpush1.msra.mxu0 0.0
        %718 = vmatprep.subr.mxu0 0.0
        %719 = vmatpush1.msra.mxu0 0.0
        %720 = vmatprep.subr.mxu0 0.0
        %721 = vmatpush1.msra.mxu0 0.0
        %722 = vmatprep.subr.mxu0 0.0
        %723 = vmatpush1.msra.mxu0 0.0
        %724 = vmatprep.subr.mxu0 0.0
        %725 = vmatpush1.msra.mxu0 0.0
        %726 = vmatprep.mubr.f32.mxu0 0.0
        %727 = vmatmul.mubr.f32.gmra.mrb[0].mxu0 %v433
        %v728 = vpop.f32.mrb[0].mxu0
        %v729 = vadd.f32 %v279, %v728
        %v730 = vpop.f32.mrb[0].mxu0
        %731 = vdwg.mxu0
        %732 = vst.msk [vmem:[%s278] sm:$0xff] %vm289, %v729
        %s733 = sand.u32 %s127, 1
        %s734 = scalar_lea.sflag [#allocation4], %s733
        %s735 = sand.u32 %s127, 1
        %s736 = smul.addr %s735, 8
        %s737 = scalar_lea.vmem [#allocation10], %s736
        // Predicated region
        $region53: #{tpu_custom_call.1} parent=35 // pred_check
          %p738 = pneg %p137
        $region54: #{tpu_custom_call.1} parent=35 // pred_check_branch
          %740 = sbr.rel (%p738) target = $region56
        $region55: #{tpu_custom_call.1} parent=35 // pred_region
          %s742 = ssub.s32 128, 128
          %743 = vsyncadd %s734, %s742
          %s744 = smul.addr %s25, 128
          %s745 = scalar_lea.hbm %s4, %s744
          %s747 = sshll.u32 %s737, 4
          %s748 = int_to_ptr.vmem [resolvable:$true] %s747
          %750 = dma.vmem_to_hbm [thread:$0]  %s748, 128, %s745, %s734
        $region56: #{tpu_custom_call.1} parent=35 // pred_fallthru
          _
      $region36: #{tpu_custom_call.1} parent=5 // pred_fallthru
        _
      %p751 = scmp.le.s32.totalorder 2, %s20
      // Predicated region
      $region57: #{tpu_custom_call.1} parent=5 // pred_check
        %p752 = pneg %p751
      $region58: #{tpu_custom_call.1} parent=5 // pred_check_branch
        %754 = sbr.rel (%p752) target = $region60
      $region59: #{tpu_custom_call.1} parent=5 // pred_region
        %s755 = ssub.s32 %s20, 2
        // Predicated region
        $region61: #{tpu_custom_call.1} parent=59 // pred_check
          %p756 = pneg %p143
        $region62: #{tpu_custom_call.1} parent=59 // pred_check_branch
          %758 = sbr.rel (%p756) target = $region64
        $region63: #{tpu_custom_call.1} parent=59 // pred_region
          %s759 = sand.u32 %s128, 1
          %s760 = scalar_lea.sflag [#allocation4], %s759
          %s761 = sand.u32 %s128, 1
          %s762 = smul.addr %s761, 8
          %s763 = scalar_lea.vmem [#allocation10], %s762
          %764 = dma.done %s760, 128
        $region64: #{tpu_custom_call.1} parent=59 // pred_fallthru
          _
      $region60: #{tpu_custom_call.1} parent=5 // pred_fallthru
        _
    $region6: #{tpu_custom_call.1} parent=1 // loop_footer
      %s24 = sadd.s32 1, %s20
    $region7: #{tpu_custom_call.1} parent=1 // loop_footer_branch
      %19 = sbr.rel target = $region3
    $region8: #{tpu_custom_call.1} parent=1 // loop_exit
      _
    %765 = vsyncpa [#allocation3], 1
    %s766 = scalar_lea.sflag [#allocation3], 1
    %767 = vsyncpa %s766, 1
    %768 = vsyncpa [#allocation6], 1
    %s769 = scalar_lea.sflag [#allocation6], 1
    %770 = vsyncpa %s769, 1
    %771 = vsyncpa [#allocation9], 1
    %772 = vsyncpa [#allocation4], 1
    %s773 = scalar_lea.sflag [#allocation4], 1
    %774 = vsyncpa %s773, 1

</llo_original>
